<compile_context>
chip_gen: v5e
topology: v5e:2x2
jax: 0.10.0
libtpu: 0.0.40
codegen_flags: <defaults>
</compile_context>

<pallas_src>
import jax
import jax.numpy as jnp
from jax.experimental import pallas as pl
from jax.experimental.pallas import tpu as pltpu

# ---- module hyper-parameters (from CA_event.__init__) ----
A1 = 1.0
A2 = 1.0
B1 = 0.2
B2 = 0.2
K_GAIN = 1.1
N_EXP = 2                       # self.n (hard-coded as x*x below)
S_HILL = 0.5                    # self.s
SCALE = 10.0                    # self.scale
INV_SCALE = 1.0 / SCALE
DIM = 2
TARGET_X = 0.62562059 * SCALE   # self.target[0, 0]
TARGET_Y = 0.62562059 * SCALE   # self.target[0, 1]
SN = S_HILL ** N_EXP            # s^n = 0.25 (python constant)

STATE_LEN = DIM * 2 + DIM * DIM + DIM   # 10
N_IN_ROWS = 6                            # x, y, e_x, e_y, wa0, wa1
N_OUT_ROWS = 4                           # dx, dy, -dx, -dy


def ca_event_forward_kernel(in_ref, out_ref):
    """GRN dynamics + actor control for one (6, TB) tile of states.

    Rows of in_ref:  0:x  1:y  2:e_x  3:e_y  4:wa0  5:wa1   (lanes = batch)
    Rows of out_ref: 0:dx 1:dy 2:-dx  3:-dy
    """
    st = in_ref[...]                       # (6, TB) float32, lane-dense
    x = st[0:1, :]
    y = st[1:2, :]
    e_x = st[2:3, :]
    e_y = st[3:4, :]
    wa0 = st[4:5, :]
    wa1 = st[5:6, :]

    # u = (W_a * (input - target)).sum(dim=1), input = (x+e_x, y+e_y)
    u = wa0 * (x + e_x - TARGET_X) + wa1 * (y + e_y - TARGET_Y)   # (1, TB)

    xs = x * INV_SCALE
    ys = y * INV_SCALE
    xn = xs * xs                            # n = 2
    yn = ys * ys
    inv_x = pl.reciprocal(SN + xn, approx=False)   # 1/(s^n + xs^n)
    inv_y = pl.reciprocal(SN + yn, approx=False)   # 1/(s^n + ys^n)
    hx = xn * inv_x
    hy = yn * inv_y

    # dx = scale*(a1*hx + b1*s^n/(s^n+yn) - k*xs + u*hx)
    dx = SCALE * ((A1 + u) * hx + (B1 * SN) * inv_y - K_GAIN * xs)
    # dy = scale*(a2*hy + b2*s^n/(s^n+xn) - k*ys)
    dy = SCALE * (A2 * hy + (B2 * SN) * inv_x - K_GAIN * ys)

    # Direct lane-dense row stores (no concatenate / cross-lane shuffles).
    out_ref[0:1, :] = dx
    out_ref[1:2, :] = dy
    out_ref[2:3, :] = -dx
    out_ref[3:4, :] = -dy


def ca_event_forward(state_packed, *, tb=128):
    """Batched forward.

    state_packed: (B, 10) float32, columns = [x, y, e_x, e_y, W_c(4), W_a(2)].
    Returns (B, 10) float32 = [dx, dy, -dx, -dy, 0, 0, 0, 0, 0, 0] per row.

    `tb` is the batch tile (multiple of 128); sweep up to 2048..32768 for
    large B — per-tile VMEM footprint is only ~40*tb bytes double-buffered.
    """
    B, D = state_packed.shape
    assert D == STATE_LEN
    dtype = state_packed.dtype

    # Pack only the 6 used components, transposed so batch is the lane axis.
    used = jnp.concatenate([state_packed[:, 0:4], state_packed[:, 8:10]],
                           axis=1)                      # (B, 6)
    inp = used.T                                         # (6, B)

    # Pad batch to a multiple of the lane tile (zeros are numerically safe:
    # s^n = 0.25 > 0 keeps all denominators non-zero).
    b_pad = pl.cdiv(B, tb) * tb
    if b_pad != B:
        inp = jnp.pad(inp, ((0, 0), (0, b_pad - B)))

    out = pl.pallas_call(
        ca_event_forward_kernel,
        out_shape=jax.ShapeDtypeStruct((N_OUT_ROWS, b_pad), dtype),
        grid=(b_pad // tb,),
        in_specs=[pl.BlockSpec((N_IN_ROWS, tb), lambda i: (0, i))],
        out_specs=pl.BlockSpec((N_OUT_ROWS, tb), lambda i: (0, i)),
        compiler_params=pltpu.CompilerParams(
            dimension_semantics=("parallel",)),
    )(inp)

    out = out[:, :B].T                                   # (B, 4)
    zeros = jnp.zeros((B, DIM * DIM + DIM), dtype)       # the 6 constant zeros
    return jnp.concatenate([out, zeros], axis=1)


def _forward_jnp(state_packed):
    """Pure-JAX forward (reference, and the cheap path for tiny B)."""
    x = state_packed[:, 0:1]
    y = state_packed[:, 1:2]
    e_x = state_packed[:, 2:3]
    e_y = state_packed[:, 3:4]
    wa = state_packed[:, 8:10]
    inp = jnp.concatenate([x + e_x, y + e_y], axis=1)
    target = jnp.array([[TARGET_X, TARGET_Y]], dtype=state_packed.dtype)
    u = jnp.sum(wa * (inp - target), axis=1, keepdims=True)
    xs, ys = x / SCALE, y / SCALE
    hx = xs ** N_EXP / (SN + xs ** N_EXP)
    hy = ys ** N_EXP / (SN + ys ** N_EXP)
    dx = SCALE * (A1 * hx + B1 * SN / (SN + ys ** N_EXP) - K_GAIN * xs + u * hx)
    dy = SCALE * (A2 * hy + B2 * SN / (SN + xs ** N_EXP) - K_GAIN * ys)
    zeros = jnp.zeros((state_packed.shape[0], DIM * DIM + DIM),
                      state_packed.dtype)
    return jnp.concatenate([dx, dy, -dx, -dy, zeros], axis=1)


def ca_event_forward_tuple(state_tuple):
    """Exact PyTorch-signature wrapper: tuple of 10 shape-(1,) arrays in,
    tuple of 10 shape-(1,) arrays out.

    Per the perf review: a B=1 Pallas launch is pure dispatch overhead
    (~30 flops of real work), so this path evaluates the pure-jnp expression
    directly instead of calling the kernel.
    """
    packed = jnp.stack([s.reshape(()) for s in state_tuple]).reshape(
        1, STATE_LEN).astype(jnp.float32)
    out = _forward_jnp(packed)
    return tuple(out[0, i:i + 1] for i in range(STATE_LEN))


if __name__ == "__main__":
    key = jax.random.PRNGKey(0)
    kx, kw, ka = jax.random.split(key, 3)

    # A small batch of independent states (like the module's `data`):
    # x, y ~ U(-1, 1); e_x = e_y = 0; small W_c / W_a.  B=400 is deliberately
    # not a multiple of the 128 tile to exercise the padding path.
    B = 400
    xy = jax.random.uniform(kx, (B, 2), jnp.float32, minval=-1.0, maxval=1.0)
    err = jnp.zeros((B, 2), jnp.float32)
    wc = jax.random.uniform(kw, (B, 4), jnp.float32, minval=-0.1, maxval=0.1)
    wa = jax.random.uniform(ka, (B, 2), jnp.float32, minval=-0.1, maxval=0.1)
    state_packed = jnp.concatenate([xy, err, wc, wa], axis=1)   # (B, 10)

    out = jax.block_until_ready(ca_event_forward(state_packed, tb=128))
    ref = _forward_jnp(state_packed)
    assert out.shape == (B, STATE_LEN)
    assert jnp.allclose(out, ref, atol=1e-5, rtol=1e-5), (out, ref)

    # Also exercise the exact tuple-of-(1,)-tensors interface of the module.
    state_tuple = tuple(state_packed[0, i:i + 1] for i in range(STATE_LEN))
    out_tuple = ca_event_forward_tuple(state_tuple)
    jax.block_until_ready(out_tuple)
    assert len(out_tuple) == STATE_LEN and out_tuple[0].shape == (1,)
    assert jnp.allclose(jnp.concatenate(out_tuple), ref[0],
                        atol=1e-5, rtol=1e-5)

    print("KERNEL_OK")
</pallas_src>

<mosaic_0001>
module attributes {stable_mosaic.version = 11 : i64} {
  func.func @ca_event_forward_kernel(%arg0: i32, %arg1: memref<6x128xf32, #tpu.memory_space<vmem>>, %arg2: memref<4x128xf32, #tpu.memory_space<vmem>>) attributes {dimension_semantics = [#tpu.dimension_semantics<parallel>], iteration_bounds = array<i64: 4>, scalar_prefetch = 0 : i64, scratch_operands = 0 : i64, tpu.core_type = #tpu.core_type<tc>, window_params = [{transform_indices = @transform_0, window_bounds = array<i64: 6, 128>}, {transform_indices = @transform_1, window_bounds = array<i64: 4, 128>}]} {
    %c0 = arith.constant 0 : index
    %c0_0 = arith.constant 0 : index
    %0 = vector.load %arg1[%c0, %c0_0] : memref<6x128xf32, #tpu.memory_space<vmem>>, vector<6x128xf32>
    %1 = vector.extract_strided_slice %0 {offsets = [0, 0], sizes = [1, 128], strides = [1, 1]} : vector<6x128xf32> to vector<1x128xf32>
    %2 = vector.extract_strided_slice %0 {offsets = [1, 0], sizes = [1, 128], strides = [1, 1]} : vector<6x128xf32> to vector<1x128xf32>
    %3 = vector.extract_strided_slice %0 {offsets = [2, 0], sizes = [1, 128], strides = [1, 1]} : vector<6x128xf32> to vector<1x128xf32>
    %4 = vector.extract_strided_slice %0 {offsets = [3, 0], sizes = [1, 128], strides = [1, 1]} : vector<6x128xf32> to vector<1x128xf32>
    %5 = vector.extract_strided_slice %0 {offsets = [4, 0], sizes = [1, 128], strides = [1, 1]} : vector<6x128xf32> to vector<1x128xf32>
    %6 = vector.extract_strided_slice %0 {offsets = [5, 0], sizes = [1, 128], strides = [1, 1]} : vector<6x128xf32> to vector<1x128xf32>
    %7 = arith.addf %1, %3 : vector<1x128xf32>
    %cst = arith.constant 6.25620604 : f32
    %8 = vector.broadcast %cst : f32 to vector<1x128xf32>
    %9 = arith.subf %7, %8 : vector<1x128xf32>
    %10 = arith.mulf %5, %9 : vector<1x128xf32>
    %11 = arith.addf %2, %4 : vector<1x128xf32>
    %cst_1 = arith.constant 6.25620604 : f32
    %12 = vector.broadcast %cst_1 : f32 to vector<1x128xf32>
    %13 = arith.subf %11, %12 : vector<1x128xf32>
    %14 = arith.mulf %6, %13 : vector<1x128xf32>
    %15 = arith.addf %10, %14 : vector<1x128xf32>
    %cst_2 = arith.constant 1.000000e-01 : f32
    %16 = vector.broadcast %cst_2 : f32 to vector<1x128xf32>
    %17 = arith.mulf %1, %16 : vector<1x128xf32>
    %cst_3 = arith.constant 1.000000e-01 : f32
    %18 = vector.broadcast %cst_3 : f32 to vector<1x128xf32>
    %19 = arith.mulf %2, %18 : vector<1x128xf32>
    %20 = arith.mulf %17, %17 : vector<1x128xf32>
    %21 = arith.mulf %19, %19 : vector<1x128xf32>
    %cst_4 = arith.constant 2.500000e-01 : f32
    %22 = vector.broadcast %cst_4 : f32 to vector<1x128xf32>
    %23 = arith.addf %22, %20 : vector<1x128xf32>
    %24 = tpu.reciprocal %23 : vector<1x128xf32> -> vector<1x128xf32>
    %cst_5 = arith.constant 2.500000e-01 : f32
    %25 = vector.broadcast %cst_5 : f32 to vector<1x128xf32>
    %26 = arith.addf %25, %21 : vector<1x128xf32>
    %27 = tpu.reciprocal %26 : vector<1x128xf32> -> vector<1x128xf32>
    %28 = arith.mulf %20, %24 : vector<1x128xf32>
    %29 = arith.mulf %21, %27 : vector<1x128xf32>
    %cst_6 = arith.constant 1.000000e+00 : f32
    %30 = vector.broadcast %cst_6 : f32 to vector<1x128xf32>
    %31 = arith.addf %30, %15 : vector<1x128xf32>
    %32 = arith.mulf %31, %28 : vector<1x128xf32>
    %cst_7 = arith.constant 5.000000e-02 : f32
    %33 = vector.broadcast %cst_7 : f32 to vector<1x128xf32>
    %34 = arith.mulf %33, %27 : vector<1x128xf32>
    %35 = arith.addf %32, %34 : vector<1x128xf32>
    %cst_8 = arith.constant 1.100000e+00 : f32
    %36 = vector.broadcast %cst_8 : f32 to vector<1x128xf32>
    %37 = arith.mulf %36, %17 : vector<1x128xf32>
    %38 = arith.subf %35, %37 : vector<1x128xf32>
    %cst_9 = arith.constant 1.000000e+01 : f32
    %39 = vector.broadcast %cst_9 : f32 to vector<1x128xf32>
    %40 = arith.mulf %39, %38 : vector<1x128xf32>
    %cst_10 = arith.constant 1.000000e+00 : f32
    %41 = vector.broadcast %cst_10 : f32 to vector<1x128xf32>
    %42 = arith.mulf %41, %29 : vector<1x128xf32>
    %cst_11 = arith.constant 5.000000e-02 : f32
    %43 = vector.broadcast %cst_11 : f32 to vector<1x128xf32>
    %44 = arith.mulf %43, %24 : vector<1x128xf32>
    %45 = arith.addf %42, %44 : vector<1x128xf32>
    %cst_12 = arith.constant 1.100000e+00 : f32
    %46 = vector.broadcast %cst_12 : f32 to vector<1x128xf32>
    %47 = arith.mulf %46, %19 : vector<1x128xf32>
    %48 = arith.subf %45, %47 : vector<1x128xf32>
    %cst_13 = arith.constant 1.000000e+01 : f32
    %49 = vector.broadcast %cst_13 : f32 to vector<1x128xf32>
    %50 = arith.mulf %49, %48 : vector<1x128xf32>
    %c0_14 = arith.constant 0 : index
    %c0_15 = arith.constant 0 : index
    %51 = vector.load %arg2[%c0_14, %c0_15] : memref<4x128xf32, #tpu.memory_space<vmem>>, vector<1x128xf32>
    tpu.vector_store %arg2[%c0_14, %c0_15], %40 {strides = array<i32>} : memref<4x128xf32, #tpu.memory_space<vmem>>, vector<1x128xf32>,
    %c1 = arith.constant 1 : index
    %c0_16 = arith.constant 0 : index
    %52 = vector.load %arg2[%c1, %c0_16] : memref<4x128xf32, #tpu.memory_space<vmem>>, vector<1x128xf32>
    tpu.vector_store %arg2[%c1, %c0_16], %50 {strides = array<i32>} : memref<4x128xf32, #tpu.memory_space<vmem>>, vector<1x128xf32>,
    %cst_17 = arith.constant 0.000000e+00 : f32
    %53 = vector.broadcast %cst_17 : f32 to vector<1x128xf32>
    %54 = arith.subf %53, %40 : vector<1x128xf32>
    %c2 = arith.constant 2 : index
    %c0_18 = arith.constant 0 : index
    %55 = vector.load %arg2[%c2, %c0_18] : memref<4x128xf32, #tpu.memory_space<vmem>>, vector<1x128xf32>
    tpu.vector_store %arg2[%c2, %c0_18], %54 {strides = array<i32>} : memref<4x128xf32, #tpu.memory_space<vmem>>, vector<1x128xf32>,
    %cst_19 = arith.constant 0.000000e+00 : f32
    %56 = vector.broadcast %cst_19 : f32 to vector<1x128xf32>
    %57 = arith.subf %56, %50 : vector<1x128xf32>
    %c3 = arith.constant 3 : index
    %c0_20 = arith.constant 0 : index
    %58 = vector.load %arg2[%c3, %c0_20] : memref<4x128xf32, #tpu.memory_space<vmem>>, vector<1x128xf32>
    tpu.vector_store %arg2[%c3, %c0_20], %57 {strides = array<i32>} : memref<4x128xf32, #tpu.memory_space<vmem>>, vector<1x128xf32>,
    return
  }
  func.func @transform_0(%arg0: i32) -> (i32, i32) {
    %c0_i32 = arith.constant 0 : i32
    %c0_i32_0 = arith.constant 0 : i32
    return %c0_i32, %arg0 : i32, i32
  }
  func.func @transform_1(%arg0: i32) -> (i32, i32) {
    %c0_i32 = arith.constant 0 : i32
    %c0_i32_0 = arith.constant 0 : i32
    return %c0_i32, %arg0 : i32, i32
  }
}

</mosaic_0001>

<llo_original>
// kernel: tpu_custom_call.1
$region0: #{tpu_custom_call.1}
  #allocation0 [shape = 'u32[]', space=smem, size = 0x4, offset = 0x4, fixed_abs, tag = 'smem constant byte address 0x4 - core index']
  #allocation1 [shape = 'u32[72,128]{1,0:T(1,128)}', space=vmem, size = 0x9000, scoped, tag = 'internal scratch']
  %s0 = inlined_call_operand.hbm [shape: f32[6,512], index: 0, kind: input, shape index: {}]
  %s1 = inlined_call_operand.hbm [shape: f32[4,512], index: 1, kind: output, shape index: {}]
  %s2 = sld [smem:[#allocation0]]
  $region41: #{tpu_custom_call.1} parent=0
    _
  %s4 = ssub.s32 1, %s2
  %s5 = scalar_select 0, %s4, %s2
  $region1: #{tpu_custom_call.1} parent=0
    #allocation2 [shape = 'u8[8192]{0}', space=vmem, size = 0x2000, scoped, tag = 'input window, operand 0']
    #allocation3 [shape = 's32[2]{0}', space=sflag, size = 0x8, scoped, tag = 'scoped memory for tpu_custom_call.1']
    #allocation4 [shape = 's32[2]{0}', space=sflag, size = 0x8, scoped, tag = 'scoped memory for tpu_custom_call.1']
    #allocation5 [shape = 'u8[4096]{0}', space=vmem, size = 0x1000, scoped, tag = 'output window, operand 0']
    %6 = vsyncpa [#allocation3], 0
    %s7 = scalar_lea.sflag [#allocation3], 1
    %8 = vsyncpa %s7, 0
    %9 = vsyncpa [#allocation4], 0
    %s10 = scalar_lea.sflag [#allocation4], 1
    %11 = vsyncpa %s10, 0
    loop: start=0, step=1, limit=6
    $region2: #{tpu_custom_call.1} parent=1 // loop_pre_header
      _
    $region3: #{tpu_custom_call.1} parent=1 // loop_header
      %s13 = sphi 0, %s17
      %p14 = scmp.ge.s32.totalorder %s13, 6
      %s23 = sphi 0, %s25
      %s26 = sphi 0, %s23
      %s27 = sphi 0, %s26
      %s43 = sphi 0, %s27
      %s49 = sphi 0, %s51
      %s52 = sphi 0, %s49
      %s53 = sphi 0, %s52
      %s69 = sphi 0, %s53
    $region4: #{tpu_custom_call.1} parent=1 // loop_header_branch
      %16 = sbr.rel (%p14) target = $region8
    $region5: #{tpu_custom_call.1} parent=1 // loop_body
      %s18 = ssub.s32 %s13, 1
      %s19 = ssub.s32 %s13, 2
      %s20 = sadd.s32 %s13, 1
      %s21 = ssub.s32 %s13, %s20
      %p22 = scmp.eq.s32.totalorder %s21, 0
      %s24 = sadd.s32 %s23, 1
      %s25 = scalar_select %p22, %s23, %s24
      %p28 = pneg %p22
      %p29 = scmp.eq.s32.totalorder %s13, 3
      %p30 = por %p28, %p29
      %p31 = scmp.ne.s32.totalorder %s23, %s26
      %p32 = scmp.eq.s32.totalorder %s13, 0
      %p33 = por %p31, %p32
      %p34 = scmp.ne.s32.totalorder %s23, %s26
      %p35 = scmp.eq.s32.totalorder %s18, 3
      %p36 = por %p34, %p35
      %p37 = scmp.ne.s32.totalorder %s26, %s27
      %p38 = scmp.eq.s32.totalorder %s18, 0
      %p39 = por %p37, %p38
      %p40 = scmp.ne.s32.totalorder %s26, %s27
      %p41 = scmp.eq.s32.totalorder %s19, 3
      %p42 = por %p40, %p41
      %p44 = scmp.ne.s32.totalorder %s27, %s43
      %p45 = scmp.eq.s32.totalorder %s19, 0
      %p46 = por %p44, %p45
      %s47 = ssub.s32 %s13, %s20
      %p48 = scmp.eq.s32.totalorder %s47, 0
      %s50 = sadd.s32 %s49, 1
      %s51 = scalar_select %p48, %s49, %s50
      %p54 = pneg %p48
      %p55 = scmp.eq.s32.totalorder %s13, 3
      %p56 = por %p54, %p55
      %p57 = scmp.ne.s32.totalorder %s49, %s52
      %p58 = scmp.eq.s32.totalorder %s13, 0
      %p59 = por %p57, %p58
      %p60 = scmp.ne.s32.totalorder %s49, %s52
      %p61 = scmp.eq.s32.totalorder %s18, 3
      %p62 = por %p60, %p61
      %p63 = scmp.ne.s32.totalorder %s52, %s53
      %p64 = scmp.eq.s32.totalorder %s18, 0
      %p65 = por %p63, %p64
      %p66 = scmp.ne.s32.totalorder %s52, %s53
      %p67 = scmp.eq.s32.totalorder %s19, 3
      %p68 = por %p66, %p67
      %p70 = scmp.ne.s32.totalorder %s53, %s69
      %p71 = scmp.eq.s32.totalorder %s19, 0
      %p72 = por %p70, %p71
      %p73 = scmp.le.s32.totalorder 1, %s13
      %p74 = scmp.lt.s32.totalorder %s13, 5
      %p75 = pnand %p73, %p74
      %p76 = pneg %p75
      // Predicated region
      $region9: #{tpu_custom_call.1} parent=5 // pred_check
        _
      $region10: #{tpu_custom_call.1} parent=5 // pred_check_branch
        %78 = sbr.rel (%p75) target = $region12
      $region11: #{tpu_custom_call.1} parent=5 // pred_region
        %s79 = ssub.s32 %s13, 1
      $region12: #{tpu_custom_call.1} parent=5 // pred_fallthru
        _
      %p80 = scmp.lt.s32.totalorder %s13, 4
      // Predicated region
      $region13: #{tpu_custom_call.1} parent=5 // pred_check
        %p81 = pneg %p80
      $region14: #{tpu_custom_call.1} parent=5 // pred_check_branch
        %83 = sbr.rel (%p81) target = $region16
      $region15: #{tpu_custom_call.1} parent=5 // pred_region
        // Predicated region
        $region17: #{tpu_custom_call.1} parent=15 // pred_check
          %p84 = pneg %p33
        $region18: #{tpu_custom_call.1} parent=15 // pred_check_branch
          %86 = sbr.rel (%p84) target = $region20
        $region19: #{tpu_custom_call.1} parent=15 // pred_region
          %s87 = sand.u32 %s23, 1
          %s88 = scalar_lea.sflag [#allocation3], %s87
          %s89 = sand.u32 %s23, 1
          %s90 = smul.addr %s89, 8
          %s91 = scalar_lea.vmem [#allocation2], %s90
          %93 = vsyncadd %s88, 0
          %s94 = smul.addr %s13, 8
          %s95 = scalar_lea.hbm %s0, %s94
          %s97 = sshll.u32 %s95, 4
          %s98 = int_to_ptr.hbm [resolvable:$true] %s97
          %s99 = sshll.u32 %s91, 4
          %s100 = int_to_ptr.vmem [resolvable:$true] %s99
          %102 = dma.hbm_to_vmem [thread:$0]  %s98, 128, %s100, %s88
        $region20: #{tpu_custom_call.1} parent=15 // pred_fallthru
          _
      $region16: #{tpu_custom_call.1} parent=5 // pred_fallthru
        _
      %p103 = scmp.le.s32.totalorder 1, %s13
      %p104 = scmp.lt.s32.totalorder %s13, 5
      %p105 = pnand %p103, %p104
      %p106 = pneg %p105
      // Predicated region
      $region21: #{tpu_custom_call.1} parent=5 // pred_check
        _
      $region22: #{tpu_custom_call.1} parent=5 // pred_check_branch
        %108 = sbr.rel (%p105) target = $region24
      $region23: #{tpu_custom_call.1} parent=5 // pred_region
        %s109 = ssub.s32 %s13, 1
        %s110 = sand.u32 %s26, 1
        %s111 = scalar_lea.sflag [#allocation3], %s110
        %s112 = sand.u32 %s26, 1
        %s113 = smul.addr %s112, 8
        %s114 = scalar_lea.vmem [#allocation2], %s113
        // Predicated region
        $region25: #{tpu_custom_call.1} parent=23 // pred_check
          %p115 = pneg %p39
        $region26: #{tpu_custom_call.1} parent=23 // pred_check_branch
          %117 = sbr.rel (%p115) target = $region28
        $region27: #{tpu_custom_call.1} parent=23 // pred_region
          %119 = dma.done %s111, 128
        $region28: #{tpu_custom_call.1} parent=23 // pred_fallthru
          _
        %s120 = sand.u32 %s26, 1
        %s121 = scalar_lea.sflag [#allocation3], %s120
        %s122 = sand.u32 %s26, 1
        %s123 = smul.addr %s122, 8
        %s124 = scalar_lea.vmem [#allocation2], %s123
        %p125 = pneg %p39
        %p126 = pneg %p36
        %p127 = pneg %p65
        %p128 = pneg %p62
        %s129 = sand.u32 %s52, 1
        %s130 = scalar_lea.sflag [#allocation4], %s129
        %s131 = sand.u32 %s52, 1
        %s132 = smul.addr %s131, 4
        %s133 = scalar_lea.vmem [#allocation5], %s132
        %v134 = vld [vmem:[%s114] sm:$0x3f]
        %v136 = vrot.slane %v134, 2
        %v138 = vadd.f32 %v134, %v136
        %v139 = vsub.f32 %v138, 6.256206
        %v141 = vrot.slane %v139, 4
        %v143 = vmul.f32 %v134, %v141
        %v145 = vrot.slane %v143, 1
        %v147 = vadd.f32 %v143, %v145
        %v148 = vmul.f32 %v134, 0.1
        %v149 = vmul.f32 %v148, %v148
        %v150 = vadd.f32 %v149, 0.25
        %v151 = vrcp.pop %v150
        %v152 = vmul.f32 %v150, %v151
        %v153 = vsub.f32 1.0, %v152
        %v154 = vmul.f32 %v151, %v153
        %v155 = vadd.f32 %v151, %v154
        %vm156 = vweird.f32 %v150
        %vm157 = vweird.f32 %v151
        %vm158 = vmor %vm156, %vm157
        %v159 = vsel %vm158, %v151, %v155
        %v160 = vand.u32 2147483647, %v150
        %vm161 = vcmp.eq.f32.partialorder %v160, 8.507059e+37
        %v162 = vand.u32 %v150, 2147483648
        %v163 = vor.u32 1.1754944e-38, %v162
        %v164 = vsel %vm161, %v163, %v159
        %v165 = vmul.f32 %v149, %v164
        %v166 = vadd.f32 %v147, 1.0
        %v168 = vrot.slane %v165, 4
        %v170 = vmul.f32 %v166, %v168
        %v171 = vmul.f32 %v164, 0.05
        %v173 = vrot.slane %v171, 5
        %v175 = vadd.f32 %v170, %v173
        %v176 = vmul.f32 %v148, 1.1
        %v178 = vrot.slane %v176, 4
        %v180 = vsub.f32 %v175, %v178
        %v181 = vmul.f32 %v180, 10.0
        %v182 = vrot.slane %v171, 7
        %v184 = vadd.f32 %v165, %v182
        %v185 = vsub.f32 %v184, %v176
        %v186 = vmul.f32 %v185, 10.0
        %187 = vst [vmem:[%s133 - $0x4] sm:$0x10] %v181
        %188 = vst [vmem:[%s133] sm:$0x2] %v186
        %v189 = vsub.f32 0.0, %v181
        %190 = vst [vmem:[%s133 - $0x2] sm:$0x10] %v189
        %v191 = vsub.f32 0.0, %v186
        %192 = vst [vmem:[%s133 + $0x2] sm:$0x2] %v191
        %s193 = sand.u32 %s52, 1
        %s194 = scalar_lea.sflag [#allocation4], %s193
        %s195 = sand.u32 %s52, 1
        %s196 = smul.addr %s195, 4
        %s197 = scalar_lea.vmem [#allocation5], %s196
        // Predicated region
        $region29: #{tpu_custom_call.1} parent=23 // pred_check
          %p198 = pneg %p62
        $region30: #{tpu_custom_call.1} parent=23 // pred_check_branch
          %200 = sbr.rel (%p198) target = $region32
        $region31: #{tpu_custom_call.1} parent=23 // pred_region
          %202 = vsyncadd %s194, 0
          %s203 = smul.addr %s18, 4
          %s204 = scalar_lea.hbm %s1, %s203
          %s206 = sshll.u32 %s197, 4
          %s207 = int_to_ptr.vmem [resolvable:$true] %s206
          %s208 = sshll.u32 %s204, 4
          %s209 = int_to_ptr.hbm [resolvable:$true] %s208
          %211 = dma.vmem_to_hbm [thread:$0]  %s207, 64, %s209, %s194
        $region32: #{tpu_custom_call.1} parent=23 // pred_fallthru
          _
      $region24: #{tpu_custom_call.1} parent=5 // pred_fallthru
        _
      %p212 = scmp.le.s32.totalorder 2, %s13
      // Predicated region
      $region33: #{tpu_custom_call.1} parent=5 // pred_check
        %p213 = pneg %p212
      $region34: #{tpu_custom_call.1} parent=5 // pred_check_branch
        %215 = sbr.rel (%p213) target = $region36
      $region35: #{tpu_custom_call.1} parent=5 // pred_region
        %s216 = ssub.s32 %s13, 2
        // Predicated region
        $region37: #{tpu_custom_call.1} parent=35 // pred_check
          %p217 = pneg %p68
        $region38: #{tpu_custom_call.1} parent=35 // pred_check_branch
          %219 = sbr.rel (%p217) target = $region40
        $region39: #{tpu_custom_call.1} parent=35 // pred_region
          %s220 = sand.u32 %s53, 1
          %s221 = scalar_lea.sflag [#allocation4], %s220
          %s222 = sand.u32 %s53, 1
          %s223 = smul.addr %s222, 4
          %s224 = scalar_lea.vmem [#allocation5], %s223
          %226 = dma.done %s221, 64
        $region40: #{tpu_custom_call.1} parent=35 // pred_fallthru
          _
      $region36: #{tpu_custom_call.1} parent=5 // pred_fallthru
        _
    $region6: #{tpu_custom_call.1} parent=1 // loop_footer
      %s17 = sadd.s32 1, %s13
    $region7: #{tpu_custom_call.1} parent=1 // loop_footer_branch
      %12 = sbr.rel target = $region3
    $region8: #{tpu_custom_call.1} parent=1 // loop_exit
      _
    %227 = vsyncpa [#allocation3], 1
    %s228 = scalar_lea.sflag [#allocation3], 1
    %229 = vsyncpa %s228, 1
    %230 = vsyncpa [#allocation4], 1
    %s231 = scalar_lea.sflag [#allocation4], 1
    %232 = vsyncpa %s231, 1

</llo_original>
